<compile_context>
chip_gen: v5e
topology: v5e:2x2
jax: 0.10.0
libtpu: 0.0.40
codegen_flags: <defaults>
</compile_context>

<pallas_src>
from functools import partial

import jax
import jax.numpy as jnp
from jax.experimental import pallas as pl
from jax.experimental.pallas import tpu as pltpu

NUM_CHAR = 80        # len(chars) in the PyTorch module
NUM_CHAR_PAD = 128   # lane-dense projection output; sliced back to NUM_CHAR in the wrapper
HID = 512
B_PAD = 8            # batch padded to one full sublane group


# ---------------------------------------------------------------------------
# Default (hot) path: in-kernel embedding gather + final Linear(512 -> NUM_CHAR).
# This is the entire returned output of the PyTorch module.
# ---------------------------------------------------------------------------
def proj_kernel(tok_ref, embed_ref, wproj_ref, bproj_ref, out_ref):
    b_pad = tok_ref.shape[0]
    # Embedding gather as a one-hot matmul (no dynamic sublane slicing, MXU friendly).
    iota = jax.lax.broadcasted_iota(jnp.int32, (b_pad, NUM_CHAR), 1)
    onehot = (iota == tok_ref[...]).astype(jnp.float32)                          # (8, 80)
    x = jnp.dot(onehot, embed_ref[...], preferred_element_type=jnp.float32)      # (8, 512)
    out_ref[...] = (jnp.dot(x, wproj_ref[...], preferred_element_type=jnp.float32)
                    + bproj_ref[...])                                             # (8, 128)


# ---------------------------------------------------------------------------
# Gated fidelity path: feature stand-in -> full GRU recurrence -> final hidden state.
# This never reaches the module's returned output (teacher forcing always fires); it is
# only run when compute_hidden=True.
# ---------------------------------------------------------------------------
def gru_kernel(img_ref, wfeat_ref, tok_ref, embed_ref, wih_ref, whh_ref,
               bih_ref, bhh_ref, hfin_ref, gx_sc, *, seq_len):
    H = HID
    b_pad = img_ref.shape[0]
    T = seq_len

    # --- Feature-extractor stand-in for the pretrained ResNet-18 pooler output.
    # TODO(synk): 'microsoft/resnet-18' backbone has no in-script Pallas equivalent;
    # replaced by global-average-pool + linear stand-in.  It only seeds the GRU hidden
    # state, which never reaches the module's returned output.
    pooled = jnp.mean(img_ref[...], axis=-1)                                      # (8, C)
    h = jnp.dot(pooled, wfeat_ref[...], preferred_element_type=jnp.float32)       # (8, H)

    # --- In-kernel embedding gather for ALL timesteps (one-hot matmul), then the
    # input-side gate pre-activations as ONE big MXU matmul, staged in a VMEM scratch
    # shaped (T*8, 3H) so each step reads a tile-aligned (8, 1536) slab.
    iota = jax.lax.broadcasted_iota(jnp.int32, (T * b_pad, NUM_CHAR), 1)
    onehot = (iota == tok_ref[...]).astype(jnp.float32)                           # (T*8, 80)
    x_all = jnp.dot(onehot, embed_ref[...], preferred_element_type=jnp.float32)   # (T*8, 512)
    gx_sc[...] = jnp.dot(x_all.astype(jnp.bfloat16), wih_ref[...],
                         preferred_element_type=jnp.float32)                      # (T*8, 3H)

    whh = whh_ref[...]                                                            # bf16, resident
    bih = jnp.broadcast_to(bih_ref[...], (b_pad, 3 * H))                          # hoisted
    bhh = jnp.broadcast_to(bhh_ref[...], (b_pad, 3 * H))                          # hoisted

    # --- Serial GRU recurrence (PyTorch gate order r, z, n), fully unrolled.
    for t in range(T):
        gx = gx_sc[t * b_pad:(t + 1) * b_pad, :] + bih                            # (8, 3H)
        gh = jnp.dot(h.astype(jnp.bfloat16), whh,
                     preferred_element_type=jnp.float32) + bhh                    # (8, 3H)
        r = jax.nn.sigmoid(gx[:, :H] + gh[:, :H])
        z = jax.nn.sigmoid(gx[:, H:2 * H] + gh[:, H:2 * H])
        n = jnp.tanh(gx[:, 2 * H:] + r * gh[:, 2 * H:])
        h = (1.0 - z) * n + z * h
    hfin_ref[...] = h


# ---------------------------------------------------------------------------
# Parameter setup helper: hoist the projection padding out of the per-call path.
# ---------------------------------------------------------------------------
def pad_projection_params(params):
    w = jnp.zeros((HID, NUM_CHAR_PAD), jnp.float32).at[:, :NUM_CHAR].set(params["w_proj"])
    b = jnp.zeros((1, NUM_CHAR_PAD), jnp.float32).at[:, :NUM_CHAR].set(params["b_proj"])
    out = dict(params)
    out["w_proj_pad"] = w
    out["b_proj_pad"] = b
    return out


VMEM_SPEC = pl.BlockSpec(memory_space=pltpu.MemorySpace.VMEM)
COMPILER_PARAMS = pltpu.CompilerParams(vmem_limit_bytes=32 * 1024 * 1024)


# ---------------------------------------------------------------------------
# Full forward.  Only tiny padding glue in plain JAX under jit; all gathers and matmuls
# run inside the Pallas kernels.
# ---------------------------------------------------------------------------
@partial(jax.jit, static_argnums=(3, 4))
def baseline_forward(params, img, true_sentence, text_max_len, compute_hidden=False):
    B = img.shape[0]

    # --- Default path: res = proj(embed(true_sentence[:, text_max_len - 2])).
    tok_last = jnp.zeros((B_PAD, 1), jnp.int32).at[:B, 0].set(
        true_sentence[:, text_max_len - 2])

    logits_pad = pl.pallas_call(
        proj_kernel,
        out_shape=jax.ShapeDtypeStruct((B_PAD, NUM_CHAR_PAD), jnp.float32),
        in_specs=[VMEM_SPEC] * 4,
        out_specs=VMEM_SPEC,
        compiler_params=COMPILER_PARAMS,
    )(tok_last, params["embed"], params["w_proj_pad"], params["b_proj_pad"])

    # permute(1,0,2) -> proj -> permute(0,2,1)  ==>  (B, NUM_CHAR, 1)
    res = logits_pad[:B, :NUM_CHAR][:, :, None]

    if not compute_hidden:
        return res

    # --- Gated fidelity path: run the GRU recurrence the PyTorch loop performs even
    # though its result never reaches the returned output.
    C = img.shape[1]
    T = text_max_len - 1
    img_flat = img.reshape(B, C, -1).astype(jnp.float32)
    img_pad = jnp.zeros((B_PAD, C, img_flat.shape[-1]), jnp.float32).at[:B].set(img_flat)

    # Token fed to the GRU at each step: step 0 = <SOS> (index 0); step t>=1 =
    # true_sentence[:, t-1] (teacher forcing always fires).  Padded batch rows use 0.
    tok_tbl = jnp.zeros((T, B_PAD), jnp.int32)
    tok_tbl = tok_tbl.at[1:, :B].set(jnp.transpose(true_sentence[:, : T - 1]))
    tok_tbl = tok_tbl.reshape(T * B_PAD, 1)

    h_final_pad = pl.pallas_call(
        partial(gru_kernel, seq_len=T),
        out_shape=jax.ShapeDtypeStruct((B_PAD, HID), jnp.float32),
        in_specs=[VMEM_SPEC] * 8,
        out_specs=VMEM_SPEC,
        scratch_shapes=[pltpu.VMEM((T * B_PAD, 3 * HID), jnp.float32)],
        compiler_params=COMPILER_PARAMS,
    )(img_pad, params["w_feat"], tok_tbl, params["embed"],
      params["w_ih"], params["w_hh"], params["b_ih"], params["b_hh"])

    return res, h_final_pad[:B]


if __name__ == "__main__":
    key = jax.random.PRNGKey(0)
    B, C, H_IMG, W_IMG = 2, 3, 16, 16
    TEXT_MAX_LEN = 8

    keys = jax.random.split(key, 10)
    params = {
        "embed":  0.02 * jax.random.normal(keys[0], (NUM_CHAR, HID), jnp.float32),
        # GRU weights stored as bf16 (MXU bf16 x bf16 -> f32 accumulate inside the kernel).
        "w_ih":   (0.02 * jax.random.normal(keys[1], (HID, 3 * HID), jnp.float32)).astype(jnp.bfloat16),
        "w_hh":   (0.02 * jax.random.normal(keys[2], (HID, 3 * HID), jnp.float32)).astype(jnp.bfloat16),
        "b_ih":   0.02 * jax.random.normal(keys[3], (1, 3 * HID), jnp.float32),
        "b_hh":   0.02 * jax.random.normal(keys[4], (1, 3 * HID), jnp.float32),
        "w_proj": 0.02 * jax.random.normal(keys[5], (HID, NUM_CHAR), jnp.float32),
        "b_proj": 0.02 * jax.random.normal(keys[6], (1, NUM_CHAR), jnp.float32),
        "w_feat": 0.02 * jax.random.normal(keys[7], (C, HID), jnp.float32),
    }
    params = pad_projection_params(params)   # one-time padding, outside the per-call path

    img = jax.random.normal(keys[8], (B, C, H_IMG, W_IMG), jnp.float32)
    true_sentence = jax.random.randint(keys[9], (B, TEXT_MAX_LEN), 0, NUM_CHAR,
                                       dtype=jnp.int32)

    # Default path: the module's actual output (no GRU recurrence on the hot path).
    res = baseline_forward(params, img, true_sentence, TEXT_MAX_LEN, False)
    res = jax.block_until_ready(res)

    # Gated fidelity path: also runs the GRU recurrence (returned output is unchanged).
    res2, h_final = baseline_forward(params, img, true_sentence, TEXT_MAX_LEN, True)
    res2 = jax.block_until_ready(res2)
    h_final = jax.block_until_ready(h_final)

    # Sanity check of the returned-output path against a plain-JAX reference.
    ref = (params["embed"][true_sentence[:, TEXT_MAX_LEN - 2]]
           @ params["w_proj"] + params["b_proj"])
    assert res.shape == (B, NUM_CHAR, 1)
    assert res2.shape == (B, NUM_CHAR, 1)
    assert h_final.shape == (B, HID)
    assert jnp.allclose(res[:, :, 0], ref, atol=1e-4, rtol=1e-3)
    assert jnp.allclose(res2[:, :, 0], ref, atol=1e-4, rtol=1e-3)

    print("KERNEL_OK")
</pallas_src>

<mosaic_0001>
module attributes {stable_mosaic.version = 11 : i64} {
  func.func @proj_kernel(%arg0: memref<8x1xi32, #tpu.memory_space<vmem>>, %arg1: memref<80x512xf32, #tpu.memory_space<vmem>>, %arg2: memref<512x128xf32, #tpu.memory_space<vmem>>, %arg3: memref<1x128xf32, #tpu.memory_space<vmem>>, %arg4: memref<8x128xf32, #tpu.memory_space<vmem>>) attributes {dimension_semantics = [], scalar_prefetch = 0 : i64, scratch_operands = 0 : i64, tpu.core_type = #tpu.core_type<tc>} {
    %0 = tpu.iota {dimensions = array<i32: 1>} : vector<8x80xi32>
    %c0 = arith.constant 0 : index
    %c0_0 = arith.constant 0 : index
    %1 = vector.load %arg0[%c0, %c0_0] : memref<8x1xi32, #tpu.memory_space<vmem>>, vector<8x1xi32>
    %2 = vector.broadcast %1 : vector<8x1xi32> to vector<8x80xi32>
    %3 = arith.cmpi eq, %0, %2 : vector<8x80xi32>
    %4 = arith.extui %3 : vector<8x80xi1> to vector<8x80xi32>
    %5 = arith.sitofp %4 : vector<8x80xi32> to vector<8x80xf32>
    %c0_1 = arith.constant 0 : index
    %c0_2 = arith.constant 0 : index
    %6 = vector.load %arg1[%c0_1, %c0_2] : memref<80x512xf32, #tpu.memory_space<vmem>>, vector<80x512xf32>
    %cst = arith.constant dense<0.000000e+00> : vector<8x512xf32>
    %7 = tpu.matmul %5, %6, %cst {dimension_numbers = #tpu.dot_dimension_numbers<[1], [0], [0], [1], [0, 0, 1, 1], [], []>} : vector<8x80xf32>, vector<80x512xf32>, vector<8x512xf32> -> vector<8x512xf32>
    %c0_3 = arith.constant 0 : index
    %c0_4 = arith.constant 0 : index
    %8 = vector.load %arg2[%c0_3, %c0_4] : memref<512x128xf32, #tpu.memory_space<vmem>>, vector<512x128xf32>
    %cst_5 = arith.constant dense<0.000000e+00> : vector<8x128xf32>
    %9 = tpu.matmul %7, %8, %cst_5 {dimension_numbers = #tpu.dot_dimension_numbers<[1], [0], [0], [1], [0, 0, 1, 1], [], []>} : vector<8x512xf32>, vector<512x128xf32>, vector<8x128xf32> -> vector<8x128xf32>
    %c0_6 = arith.constant 0 : index
    %c0_7 = arith.constant 0 : index
    %10 = vector.load %arg3[%c0_6, %c0_7] : memref<1x128xf32, #tpu.memory_space<vmem>>, vector<1x128xf32>
    %11 = vector.broadcast %10 : vector<1x128xf32> to vector<8x128xf32>
    %12 = arith.addf %9, %11 : vector<8x128xf32>
    %c0_8 = arith.constant 0 : index
    %c0_9 = arith.constant 0 : index
    %13 = vector.load %arg4[%c0_8, %c0_9] : memref<8x128xf32, #tpu.memory_space<vmem>>, vector<8x128xf32>
    tpu.vector_store %arg4[%c0_8, %c0_9], %12 {strides = array<i32>} : memref<8x128xf32, #tpu.memory_space<vmem>>, vector<8x128xf32>,
    return
  }
}

</mosaic_0001>

<llo_original>
// kernel: baseline_forward.1
$region0: #{baseline_forward.1}
  #allocation0 [shape = 'u32[]', space=smem, size = 0x4, offset = 0x4, fixed_abs, tag = 'smem constant byte address 0x4 - core index']
  #allocation1 [shape = 'u32[72,128]{1,0:T(1,128)}', space=vmem, size = 0x9000, scoped, tag = 'internal scratch']
  %s0 = inlined_call_operand.vmem [shape: s32[8,1], index: 0, kind: input, shape index: {}]
  %s1 = inlined_call_operand.hbm [shape: f32[80,512], index: 1, kind: input, shape index: {}]
  %s2 = inlined_call_operand.hbm [shape: f32[512,128], index: 2, kind: input, shape index: {}]
  %s3 = inlined_call_operand.vmem [shape: f32[1,128], index: 3, kind: input, shape index: {}]
  %s4 = inlined_call_operand.vmem [shape: f32[8,128], index: 4, kind: output, shape index: {}]
  %s5 = sld [smem:[#allocation0]]
  $region34: #{baseline_forward.1} parent=0
    _
  %s7 = ssub.s32 1, %s5
  %s8 = scalar_select 0, %s7, %s5
  $region1: #{baseline_forward.1} parent=0
    #allocation2 [shape = 'u8[163840]{0}', space=vmem, size = 0x28000, scoped, tag = 'input window, operand 1, single buffered']
    #allocation3 [shape = 's32[1]{0}', space=sflag, size = 0x4, scoped, tag = 'scoped memory for baseline_forward.1']
    #allocation4 [shape = 'u8[262144]{0}', space=vmem, size = 0x40000, scoped, tag = 'input window, operand 2, single buffered']
    #allocation5 [shape = 's32[1]{0}', space=sflag, size = 0x4, scoped, tag = 'scoped memory for baseline_forward.1']
    %9 = vsyncpa [#allocation3], 0
    %10 = vsyncpa [#allocation5], 0
    // Predicated region
    $region2: #{baseline_forward.1} parent=1 // pred_check
      _
    $region3: #{baseline_forward.1} parent=1 // pred_check_branch
      %12 = sbr.rel (0) target = $region5
    $region4: #{baseline_forward.1} parent=1 // pred_region
      _
    $region5: #{baseline_forward.1} parent=1 // pred_fallthru
      _
    // Predicated region
    $region6: #{baseline_forward.1} parent=1 // pred_check
      _
    $region7: #{baseline_forward.1} parent=1 // pred_check_branch
      %14 = sbr.rel (0) target = $region9
    $region8: #{baseline_forward.1} parent=1 // pred_region
      %16 = vsyncadd [#allocation3], 0
      %s17 = sshll.u32 %s1, 4
      %s18 = int_to_ptr.hbm [resolvable:$true] %s17
      %s19 = sshll.u32 [#allocation2], 4
      %s20 = int_to_ptr.vmem [resolvable:$true] %s19
      %25 = dma.hbm_to_vmem [thread:$0]  %s18, 5120, %s20, [#allocation3], 512, 512, 32
    $region9: #{baseline_forward.1} parent=1 // pred_fallthru
      _
    // Predicated region
    $region10: #{baseline_forward.1} parent=1 // pred_check
      _
    $region11: #{baseline_forward.1} parent=1 // pred_check_branch
      %27 = sbr.rel (0) target = $region13
    $region12: #{baseline_forward.1} parent=1 // pred_region
      %29 = vsyncadd [#allocation5], 0
      %s30 = sshll.u32 %s2, 4
      %s31 = int_to_ptr.hbm [resolvable:$true] %s30
      %s32 = sshll.u32 [#allocation4], 4
      %s33 = int_to_ptr.vmem [resolvable:$true] %s32
      %38 = dma.hbm_to_vmem [thread:$0]  %s31, 8192, %s33, [#allocation5], 128, 128, 8
    $region13: #{baseline_forward.1} parent=1 // pred_fallthru
      _
    // Predicated region
    $region14: #{baseline_forward.1} parent=1 // pred_check
      _
    $region15: #{baseline_forward.1} parent=1 // pred_check_branch
      %40 = sbr.rel (0) target = $region17
    $region16: #{baseline_forward.1} parent=1 // pred_region
      _
    $region17: #{baseline_forward.1} parent=1 // pred_fallthru
      _
    // Predicated region
    $region18: #{baseline_forward.1} parent=1 // pred_check
      _
    $region19: #{baseline_forward.1} parent=1 // pred_check_branch
      %42 = sbr.rel (0) target = $region21
    $region20: #{baseline_forward.1} parent=1 // pred_region
      %44 = dma.done [#allocation3], 5120
    $region21: #{baseline_forward.1} parent=1 // pred_fallthru
      _
    // Predicated region
    $region22: #{baseline_forward.1} parent=1 // pred_check
      _
    $region23: #{baseline_forward.1} parent=1 // pred_check_branch
      %46 = sbr.rel (0) target = $region25
    $region24: #{baseline_forward.1} parent=1 // pred_region
      %48 = dma.done [#allocation5], 8192
    $region25: #{baseline_forward.1} parent=1 // pred_fallthru
      _
    %v49 = vlaneseq
    %v50 = vand.u32 %v49, 127
    %v51 = vld [vmem:[%s0] sm:$0xff]
    %52 = vset.pattern.permute.xlu0 0
    %53 = vperm.xlu0 %52, %v51
    %v54 = vpop.permute.xlu0 %53
    %vm55 = vcmp.eq.s32.totalorder %v50, %v54
    %v56 = vsel %vm55, 1, 0
    %v57 = vcvt.s32.f32 %v56
    %v58 = vld [vmem:[#allocation2] sm:$0xff]
    %v59 = vld [vmem:[#allocation2 + $0x8] sm:$0xff]
    %v60 = vld [vmem:[#allocation2 + $0x10] sm:$0xff]
    %v61 = vld [vmem:[#allocation2 + $0x18] sm:$0xff]
    %v62 = vld [vmem:[#allocation2 + $0x20] sm:$0xff]
    %v63 = vld [vmem:[#allocation2 + $0x28] sm:$0xff]
    %v64 = vld [vmem:[#allocation2 + $0x30] sm:$0xff]
    %v65 = vld [vmem:[#allocation2 + $0x38] sm:$0xff]
    %v66 = vld [vmem:[#allocation2 + $0x40] sm:$0xff]
    %v67 = vld [vmem:[#allocation2 + $0x48] sm:$0xff]
    %v68 = vld [vmem:[#allocation2 + $0x50] sm:$0xff]
    %v69 = vld [vmem:[#allocation2 + $0x58] sm:$0xff]
    %v70 = vld [vmem:[#allocation2 + $0x60] sm:$0xff]
    %v71 = vld [vmem:[#allocation2 + $0x68] sm:$0xff]
    %v72 = vld [vmem:[#allocation2 + $0x70] sm:$0xff]
    %v73 = vld [vmem:[#allocation2 + $0x78] sm:$0xff]
    %v74 = vld [vmem:[#allocation2 + $0x80] sm:$0xff]
    %v75 = vld [vmem:[#allocation2 + $0x88] sm:$0xff]
    %v76 = vld [vmem:[#allocation2 + $0x90] sm:$0xff]
    %v77 = vld [vmem:[#allocation2 + $0x98] sm:$0xff]
    %v78 = vld [vmem:[#allocation2 + $0xa0] sm:$0xff]
    %v79 = vld [vmem:[#allocation2 + $0xa8] sm:$0xff]
    %v80 = vld [vmem:[#allocation2 + $0xb0] sm:$0xff]
    %v81 = vld [vmem:[#allocation2 + $0xb8] sm:$0xff]
    %v82 = vld [vmem:[#allocation2 + $0xc0] sm:$0xff]
    %v83 = vld [vmem:[#allocation2 + $0xc8] sm:$0xff]
    %v84 = vld [vmem:[#allocation2 + $0xd0] sm:$0xff]
    %v85 = vld [vmem:[#allocation2 + $0xd8] sm:$0xff]
    %v86 = vld [vmem:[#allocation2 + $0xe0] sm:$0xff]
    %v87 = vld [vmem:[#allocation2 + $0xe8] sm:$0xff]
    %v88 = vld [vmem:[#allocation2 + $0xf0] sm:$0xff]
    %v89 = vld [vmem:[#allocation2 + $0xf8] sm:$0xff]
    %v90 = vld [vmem:[#allocation2 + $0x100] sm:$0xff]
    %v91 = vld [vmem:[#allocation2 + $0x108] sm:$0xff]
    %v92 = vld [vmem:[#allocation2 + $0x110] sm:$0xff]
    %v93 = vld [vmem:[#allocation2 + $0x118] sm:$0xff]
    %v94 = vld [vmem:[#allocation2 + $0x120] sm:$0xff]
    %v95 = vld [vmem:[#allocation2 + $0x128] sm:$0xff]
    %v96 = vld [vmem:[#allocation2 + $0x130] sm:$0xff]
    %v97 = vld [vmem:[#allocation2 + $0x138] sm:$0xff]
    %vm98 = vcmask 654336
    %v100 = vsel %vm98, %v57, 0
    %102 = vmatpush.msra.mxu0 0.0
    %103 = vmatpush.msra.mxu0 0.0
    %104 = vmatpush.msra.mxu0 0.0
    %105 = vmatpush.msra.mxu0 0.0
    %106 = vmatpush.msra.mxu0 0.0
    %107 = vmatpush.msra.mxu0 0.0
    %108 = vmatpush.msra.mxu0 %v94
    %109 = vmatpush.msra.mxu0 %v90
    %110 = vmatpush.msra.mxu0 %v86
    %111 = vmatpush.msra.mxu0 %v82
    %112 = vmatpush.msra.mxu0 %v78
    %113 = vmatpush.msra.mxu0 %v74
    %114 = vmatpush.msra.mxu0 %v70
    %115 = vmatpush.msra.mxu0 %v66
    %116 = vmatpush.msra.mxu0 %v62
    %117 = vmatpush.msra.mxu0 %v58
    %118 = vmatmul.f32.gmra.mxu0 %v100
    %v119 = vpop.f32.mrf.mxu0
    %v120 = vadd.f32 0.0, %v119
    %121 = vdwg.mxu0
    %122 = vmatpush.msra.mxu0 0.0
    %123 = vmatpush.msra.mxu0 0.0
    %124 = vmatpush.msra.mxu0 0.0
    %125 = vmatpush.msra.mxu0 0.0
    %126 = vmatpush.msra.mxu0 0.0
    %127 = vmatpush.msra.mxu0 0.0
    %128 = vmatpush.msra.mxu0 %v95
    %129 = vmatpush.msra.mxu0 %v91
    %130 = vmatpush.msra.mxu0 %v87
    %131 = vmatpush.msra.mxu0 %v83
    %132 = vmatpush.msra.mxu0 %v79
    %133 = vmatpush.msra.mxu0 %v75
    %134 = vmatpush.msra.mxu0 %v71
    %135 = vmatpush.msra.mxu0 %v67
    %136 = vmatpush.msra.mxu0 %v63
    %137 = vmatpush.msra.mxu0 %v59
    %138 = vmatmul.f32.gmra.mxu0 %v100
    %v139 = vpop.f32.mrf.mxu0
    %v140 = vadd.f32 0.0, %v139
    %141 = vdwg.mxu0
    %142 = vmatpush.msra.mxu0 0.0
    %143 = vmatpush.msra.mxu0 0.0
    %144 = vmatpush.msra.mxu0 0.0
    %145 = vmatpush.msra.mxu0 0.0
    %146 = vmatpush.msra.mxu0 0.0
    %147 = vmatpush.msra.mxu0 0.0
    %148 = vmatpush.msra.mxu0 %v96
    %149 = vmatpush.msra.mxu0 %v92
    %150 = vmatpush.msra.mxu0 %v88
    %151 = vmatpush.msra.mxu0 %v84
    %152 = vmatpush.msra.mxu0 %v80
    %153 = vmatpush.msra.mxu0 %v76
    %154 = vmatpush.msra.mxu0 %v72
    %155 = vmatpush.msra.mxu0 %v68
    %156 = vmatpush.msra.mxu0 %v64
    %157 = vmatpush.msra.mxu0 %v60
    %158 = vmatmul.f32.gmra.mxu0 %v100
    %v159 = vpop.f32.mrf.mxu0
    %v160 = vadd.f32 0.0, %v159
    %161 = vdwg.mxu0
    %162 = vmatpush.msra.mxu0 0.0
    %163 = vmatpush.msra.mxu0 0.0
    %164 = vmatpush.msra.mxu0 0.0
    %165 = vmatpush.msra.mxu0 0.0
    %166 = vmatpush.msra.mxu0 0.0
    %167 = vmatpush.msra.mxu0 0.0
    %168 = vmatpush.msra.mxu0 %v97
    %169 = vmatpush.msra.mxu0 %v93
    %170 = vmatpush.msra.mxu0 %v89
    %171 = vmatpush.msra.mxu0 %v85
    %172 = vmatpush.msra.mxu0 %v81
    %173 = vmatpush.msra.mxu0 %v77
    %174 = vmatpush.msra.mxu0 %v73
    %175 = vmatpush.msra.mxu0 %v69
    %176 = vmatpush.msra.mxu0 %v65
    %177 = vmatpush.msra.mxu0 %v61
    %178 = vmatmul.f32.gmra.mxu0 %v100
    %v179 = vpop.f32.mrf.mxu0
    %v180 = vadd.f32 0.0, %v179
    %181 = vdwg.mxu0
    %v182 = vld [vmem:[#allocation4] sm:$0xff]
    %v183 = vld [vmem:[#allocation4 + $0x8] sm:$0xff]
    %v184 = vld [vmem:[#allocation4 + $0x10] sm:$0xff]
    %v185 = vld [vmem:[#allocation4 + $0x18] sm:$0xff]
    %v186 = vld [vmem:[#allocation4 + $0x20] sm:$0xff]
    %v187 = vld [vmem:[#allocation4 + $0x28] sm:$0xff]
    %v188 = vld [vmem:[#allocation4 + $0x30] sm:$0xff]
    %v189 = vld [vmem:[#allocation4 + $0x38] sm:$0xff]
    %v190 = vld [vmem:[#allocation4 + $0x40] sm:$0xff]
    %v191 = vld [vmem:[#allocation4 + $0x48] sm:$0xff]
    %v192 = vld [vmem:[#allocation4 + $0x50] sm:$0xff]
    %v193 = vld [vmem:[#allocation4 + $0x58] sm:$0xff]
    %v194 = vld [vmem:[#allocation4 + $0x60] sm:$0xff]
    %v195 = vld [vmem:[#allocation4 + $0x68] sm:$0xff]
    %v196 = vld [vmem:[#allocation4 + $0x70] sm:$0xff]
    %v197 = vld [vmem:[#allocation4 + $0x78] sm:$0xff]
    %v198 = vld [vmem:[#allocation4 + $0x80] sm:$0xff]
    %v199 = vld [vmem:[#allocation4 + $0x88] sm:$0xff]
    %v200 = vld [vmem:[#allocation4 + $0x90] sm:$0xff]
    %v201 = vld [vmem:[#allocation4 + $0x98] sm:$0xff]
    %v202 = vld [vmem:[#allocation4 + $0xa0] sm:$0xff]
    %v203 = vld [vmem:[#allocation4 + $0xa8] sm:$0xff]
    %v204 = vld [vmem:[#allocation4 + $0xb0] sm:$0xff]
    %v205 = vld [vmem:[#allocation4 + $0xb8] sm:$0xff]
    %v206 = vld [vmem:[#allocation4 + $0xc0] sm:$0xff]
    %v207 = vld [vmem:[#allocation4 + $0xc8] sm:$0xff]
    %v208 = vld [vmem:[#allocation4 + $0xd0] sm:$0xff]
    %v209 = vld [vmem:[#allocation4 + $0xd8] sm:$0xff]
    %v210 = vld [vmem:[#allocation4 + $0xe0] sm:$0xff]
    %v211 = vld [vmem:[#allocation4 + $0xe8] sm:$0xff]
    %v212 = vld [vmem:[#allocation4 + $0xf0] sm:$0xff]
    %v213 = vld [vmem:[#allocation4 + $0xf8] sm:$0xff]
    %v214 = vld [vmem:[#allocation4 + $0x100] sm:$0xff]
    %v215 = vld [vmem:[#allocation4 + $0x108] sm:$0xff]
    %v216 = vld [vmem:[#allocation4 + $0x110] sm:$0xff]
    %v217 = vld [vmem:[#allocation4 + $0x118] sm:$0xff]
    %v218 = vld [vmem:[#allocation4 + $0x120] sm:$0xff]
    %v219 = vld [vmem:[#allocation4 + $0x128] sm:$0xff]
    %v220 = vld [vmem:[#allocation4 + $0x130] sm:$0xff]
    %v221 = vld [vmem:[#allocation4 + $0x138] sm:$0xff]
    %v222 = vld [vmem:[#allocation4 + $0x140] sm:$0xff]
    %v223 = vld [vmem:[#allocation4 + $0x148] sm:$0xff]
    %v224 = vld [vmem:[#allocation4 + $0x150] sm:$0xff]
    %v225 = vld [vmem:[#allocation4 + $0x158] sm:$0xff]
    %v226 = vld [vmem:[#allocation4 + $0x160] sm:$0xff]
    %v227 = vld [vmem:[#allocation4 + $0x168] sm:$0xff]
    %v228 = vld [vmem:[#allocation4 + $0x170] sm:$0xff]
    %v229 = vld [vmem:[#allocation4 + $0x178] sm:$0xff]
    %v230 = vld [vmem:[#allocation4 + $0x180] sm:$0xff]
    %v231 = vld [vmem:[#allocation4 + $0x188] sm:$0xff]
    %v232 = vld [vmem:[#allocation4 + $0x190] sm:$0xff]
    %v233 = vld [vmem:[#allocation4 + $0x198] sm:$0xff]
    %v234 = vld [vmem:[#allocation4 + $0x1a0] sm:$0xff]
    %v235 = vld [vmem:[#allocation4 + $0x1a8] sm:$0xff]
    %v236 = vld [vmem:[#allocation4 + $0x1b0] sm:$0xff]
    %v237 = vld [vmem:[#allocation4 + $0x1b8] sm:$0xff]
    %v238 = vld [vmem:[#allocation4 + $0x1c0] sm:$0xff]
    %v239 = vld [vmem:[#allocation4 + $0x1c8] sm:$0xff]
    %v240 = vld [vmem:[#allocation4 + $0x1d0] sm:$0xff]
    %v241 = vld [vmem:[#allocation4 + $0x1d8] sm:$0xff]
    %v242 = vld [vmem:[#allocation4 + $0x1e0] sm:$0xff]
    %v243 = vld [vmem:[#allocation4 + $0x1e8] sm:$0xff]
    %v244 = vld [vmem:[#allocation4 + $0x1f0] sm:$0xff]
    %v245 = vld [vmem:[#allocation4 + $0x1f8] sm:$0xff]
    %v246 = vld [vmem:[%s3] sm:$0x1]
    %v248 = vperm.slane %v246, 0
    %250 = vmatpush.msra.mxu0 %v197
    %251 = vmatpush.msra.mxu0 %v196
    %252 = vmatpush.msra.mxu0 %v195
    %253 = vmatpush.msra.mxu0 %v194
    %254 = vmatpush.msra.mxu0 %v193
    %255 = vmatpush.msra.mxu0 %v192
    %256 = vmatpush.msra.mxu0 %v191
    %257 = vmatpush.msra.mxu0 %v190
    %258 = vmatpush.msra.mxu0 %v189
    %259 = vmatpush.msra.mxu0 %v188
    %260 = vmatpush.msra.mxu0 %v187
    %261 = vmatpush.msra.mxu0 %v186
    %262 = vmatpush.msra.mxu0 %v185
    %263 = vmatpush.msra.mxu0 %v184
    %264 = vmatpush.msra.mxu0 %v183
    %265 = vmatpush.msra.mxu0 %v182
    %266 = vmatmul.f32.gmra.mxu0 %v120
    %v267 = vpop.f32.mrf.mxu0
    %v268 = vadd.f32 %v248, %v267
    %269 = vdwg.mxu0
    %270 = vmatpush.msra.mxu0 %v213
    %271 = vmatpush.msra.mxu0 %v212
    %272 = vmatpush.msra.mxu0 %v211
    %273 = vmatpush.msra.mxu0 %v210
    %274 = vmatpush.msra.mxu0 %v209
    %275 = vmatpush.msra.mxu0 %v208
    %276 = vmatpush.msra.mxu0 %v207
    %277 = vmatpush.msra.mxu0 %v206
    %278 = vmatpush.msra.mxu0 %v205
    %279 = vmatpush.msra.mxu0 %v204
    %280 = vmatpush.msra.mxu0 %v203
    %281 = vmatpush.msra.mxu0 %v202
    %282 = vmatpush.msra.mxu0 %v201
    %283 = vmatpush.msra.mxu0 %v200
    %284 = vmatpush.msra.mxu0 %v199
    %285 = vmatpush.msra.mxu0 %v198
    %286 = vmatmul.f32.gmra.mxu0 %v140
    %v287 = vpop.f32.mrf.mxu0
    %v288 = vadd.f32 %v268, %v287
    %289 = vdwg.mxu0
    %290 = vmatpush.msra.mxu0 %v229
    %291 = vmatpush.msra.mxu0 %v228
    %292 = vmatpush.msra.mxu0 %v227
    %293 = vmatpush.msra.mxu0 %v226
    %294 = vmatpush.msra.mxu0 %v225
    %295 = vmatpush.msra.mxu0 %v224
    %296 = vmatpush.msra.mxu0 %v223
    %297 = vmatpush.msra.mxu0 %v222
    %298 = vmatpush.msra.mxu0 %v221
    %299 = vmatpush.msra.mxu0 %v220
    %300 = vmatpush.msra.mxu0 %v219
    %301 = vmatpush.msra.mxu0 %v218
    %302 = vmatpush.msra.mxu0 %v217
    %303 = vmatpush.msra.mxu0 %v216
    %304 = vmatpush.msra.mxu0 %v215
    %305 = vmatpush.msra.mxu0 %v214
    %306 = vmatmul.f32.gmra.mxu0 %v160
    %v307 = vpop.f32.mrf.mxu0
    %v308 = vadd.f32 %v288, %v307
    %309 = vdwg.mxu0
    %310 = vmatpush.msra.mxu0 %v245
    %311 = vmatpush.msra.mxu0 %v244
    %312 = vmatpush.msra.mxu0 %v243
    %313 = vmatpush.msra.mxu0 %v242
    %314 = vmatpush.msra.mxu0 %v241
    %315 = vmatpush.msra.mxu0 %v240
    %316 = vmatpush.msra.mxu0 %v239
    %317 = vmatpush.msra.mxu0 %v238
    %318 = vmatpush.msra.mxu0 %v237
    %319 = vmatpush.msra.mxu0 %v236
    %320 = vmatpush.msra.mxu0 %v235
    %321 = vmatpush.msra.mxu0 %v234
    %322 = vmatpush.msra.mxu0 %v233
    %323 = vmatpush.msra.mxu0 %v232
    %324 = vmatpush.msra.mxu0 %v231
    %325 = vmatpush.msra.mxu0 %v230
    %326 = vmatmul.f32.gmra.mxu0 %v180
    %v327 = vpop.f32.mrf.mxu0
    %v328 = vadd.f32 %v308, %v327
    %329 = vdwg.mxu0
    %330 = vst [vmem:[%s4] sm:$0xff] %v328
    // Predicated region
    $region26: #{baseline_forward.1} parent=1 // pred_check
      _
    $region27: #{baseline_forward.1} parent=1 // pred_check_branch
      %332 = sbr.rel (0) target = $region29
    $region28: #{baseline_forward.1} parent=1 // pred_region
      _
    $region29: #{baseline_forward.1} parent=1 // pred_fallthru
      _
    // Predicated region
    $region30: #{baseline_forward.1} parent=1 // pred_check
      _
    $region31: #{baseline_forward.1} parent=1 // pred_check_branch
      %334 = sbr.rel (0) target = $region33
    $region32: #{baseline_forward.1} parent=1 // pred_region
      _
    $region33: #{baseline_forward.1} parent=1 // pred_fallthru
      _
    %335 = vsyncpa [#allocation3], 1
    %336 = vsyncpa [#allocation5], 1

</llo_original>
